<compile_context>
chip_gen: v6e
topology: v6e:2x2x1
jax: 0.10.0
libtpu: 0.0.40
codegen_flags: <defaults>
</compile_context>

<pallas_src>
import jax
import jax.numpy as jnp
from jax import lax
from jax.experimental import pallas as pl
from jax.experimental.pallas import tpu as pltpu


def _pick_batch_tile(B, requested):
    """Lane-dense (multiple-of-128) batch tile with >= 4 grid steps when possible."""
    target = 32 * 1024 if requested is None else int(requested)
    target = max(128, (target // 128) * 128)
    # Aim for >= 4 grid steps (>= 2 per v7x TensorCore) so both cores get work
    # AND each core still double-buffers its input DMA.
    quarter = ((max(B // 4, 1) + 127) // 128) * 128
    return max(128, min(target, quarter))


def ffnn_forward(x, params, *, batch_tile=None, sub_tile=2048,
                 compute_dtype=jnp.bfloat16):
    """Fused FFNN forward: Linear->ReLU->Linear->ReLU->Linear, then squeeze(-1).

    x: (B, input_dim).  params: PyTorch-native layout, W_i (out,in), b_i (out,).
    compute_dtype controls the MXU operand dtype only (accumulation is f32).
    """
    B, in_dim = x.shape
    w1, b1 = params["w1"], params["b1"]
    w2, b2 = params["w2"], params["b2"]
    w3, b3 = params["w3"], params["b3"]
    h1, h2 = w1.shape[0], w2.shape[0]
    out_dim = w3.shape[0]

    bt = _pick_batch_tile(B, batch_tile)
    n_tiles = pl.cdiv(B, bt)
    Bp = n_tiles * bt

    # Sub-slice width for the in-kernel compute loop (bounds the (hidden, width)
    # f32 activation working set); multiple of 128 that divides bt.
    sub = max(128, (min(int(sub_tile), bt) // 128) * 128)
    while bt % sub:
        sub -= 128
    n_sub = bt // sub

    # Only materialize padding for a ragged tail (aligned case: zero extra HBM passes).
    x_in = x if Bp == B else jnp.pad(x, ((0, Bp - B), (0, 0)))

    cdt = compute_dtype
    w1k = w1.astype(cdt)                           # (h1, in)   MXU operand
    w2k = w2.astype(cdt)                           # (h2, h1)   MXU operand
    b1k = b1.reshape(-1, 1).astype(jnp.float32)    # (h1, 1)    f32 VPU add
    b2k = b2.reshape(-1, 1).astype(jnp.float32)    # (h2, 1)
    b3k = b3.reshape(-1, 1).astype(jnp.float32)    # (out, 1)
    if out_dim == 1:
        w3k = w3.T.astype(jnp.float32)             # (h2, 1) column -> VPU mul + sublane reduce
    else:
        w3k = w3.astype(cdt)                       # (out, h2)  MXU operand

    def kernel(x_ref, w1_ref, b1_ref, w2_ref, b2_ref, w3_ref, b3_ref, o_ref):
        # Weights/biases are VMEM-resident across all grid steps.
        w1v = w1_ref[...]
        b1v = b1_ref[...]
        w2v = w2_ref[...]
        b2v = b2_ref[...]
        w3v = w3_ref[...]
        b3v = b3_ref[...]

        def block(xs):
            # xs: (width, in_dim) rows of x in natural layout.  Contract the
            # in_dim (last) dims of both operands so activations come out as
            # (hidden, width) with batch on the 128-lane axis; the implied
            # transpose of the x sub-tile is handled on-chip by Mosaic.
            h = lax.dot_general(w1v, xs.astype(cdt),
                                (((1,), (1,)), ((), ())),
                                preferred_element_type=jnp.float32)
            h = jnp.maximum(h + b1v, 0.0)
            h = jnp.dot(w2v, h.astype(cdt), preferred_element_type=jnp.float32)
            h = jnp.maximum(h + b2v, 0.0)
            if out_dim == 1:
                # hidden -> 1 projection: VPU multiply + sublane (XLU) reduce;
                # keeps the 1-row matmul off the MXU and the result lane-dense.
                return jnp.sum(h * w3v, axis=0, keepdims=True) + b3v
            return jnp.dot(w3v, h.astype(cdt),
                           preferred_element_type=jnp.float32) + b3v

        if n_sub == 1:
            o_ref[0] = block(x_ref[...]).astype(o_ref.dtype)
        else:
            def body(s, carry):
                start = pl.multiple_of(s * sub, 128)
                out = block(x_ref[pl.ds(start, sub), :])
                o_ref[s] = out.astype(o_ref.dtype)   # dynamic leading-dim store
                return carry
            lax.fori_loop(0, n_sub, body, 0, unroll=False)

    # VMEM budget: double-buffered x / out tiles + resident weights + per-sub
    # activation working set.  Raise the scoped limit only as far as needed
    # (v7x has only 64 MiB physical VMEM per TensorCore).
    w_bytes = sum(int(a.size) * a.dtype.itemsize
                  for a in (w1k, b1k, w2k, b2k, w3k, b3k))
    vmem_need = (2 * bt * in_dim * x.dtype.itemsize
                 + 2 * bt * out_dim * x.dtype.itemsize
                 + w_bytes
                 + 8 * sub * max(h1, h2, out_dim) * 4
                 + (1 << 20))
    vmem_limit = int(min(max(2 * vmem_need, 32 << 20), 48 << 20))

    flops = 2 * Bp * (in_dim * h1 + h1 * h2 + h2 * out_dim)
    bytes_accessed = int(Bp * in_dim * x.dtype.itemsize
                         + Bp * out_dim * x.dtype.itemsize
                         + w_bytes)

    full = lambda a: pl.BlockSpec(a.shape, lambda i: (0, 0))  # VMEM-resident

    yt = pl.pallas_call(
        kernel,
        out_shape=jax.ShapeDtypeStruct((n_tiles * n_sub, out_dim, sub), x.dtype),
        grid_spec=pltpu.PrefetchScalarGridSpec(
            num_scalar_prefetch=0,
            grid=(n_tiles,),
            in_specs=[
                pl.BlockSpec((bt, in_dim), lambda i: (i, 0)),   # streamed x rows
                full(w1k), full(b1k),
                full(w2k), full(b2k),
                full(w3k), full(b3k),
            ],
            out_specs=pl.BlockSpec((n_sub, out_dim, sub), lambda i: (i, 0, 0)),
        ),
        compiler_params=pltpu.CompilerParams(
            dimension_semantics=("parallel",),        # megacore / v7x 2-TC
            vmem_limit_bytes=vmem_limit),
        cost_estimate=pl.CostEstimate(
            flops=flops, transcendentals=0, bytes_accessed=bytes_accessed),
    )(x_in, w1k, b1k, w2k, b2k, w3k, b3k)

    # FFNN.forward: x = self.layers(x); x = x.squeeze(-1)
    if out_dim == 1:
        return yt.reshape(Bp)[:B]
    return jnp.transpose(yt, (0, 2, 1)).reshape(Bp, out_dim)[:B]


def init_params(key, input_dim, hidden_layers, output_dim):
    """Deterministic init; PyTorch-native layout: W (out,in), b (out,)."""
    dims = [input_dim] + list(hidden_layers) + [output_dim]
    params = {}
    for idx, (din, dout) in enumerate(zip(dims[:-1], dims[1:]), start=1):
        key, kw, kb = jax.random.split(key, 3)
        bound = 1.0 / jnp.sqrt(din)  # nn.Linear default uniform init range
        params[f"w{idx}"] = jax.random.uniform(
            kw, (dout, din), jnp.float32, -bound, bound)
        params[f"b{idx}"] = jax.random.uniform(
            kb, (dout,), jnp.float32, -bound, bound)
    return params


if __name__ == "__main__":
    # FFNN(input_dim=16, output_dim=1, hidden_layers=[32, 32]): ReLU, bias,
    # no dropout / batchnorm (the defaults the kernel implements).
    input_dim, hidden_layers, output_dim = 16, [32, 32], 1
    batch = 4096   # -> bt=1024, 4 grid steps (>= 2 per v7x TensorCore), no padding

    key = jax.random.PRNGKey(0)
    key, kx = jax.random.split(key)
    x = jax.random.normal(kx, (batch, input_dim), jnp.float32)
    params = init_params(key, input_dim, hidden_layers, output_dim)

    # Production default: bf16 MXU operands, f32 accumulation.
    out_bf16 = ffnn_forward(x, params)
    # Full-precision variant (also exercises the in-kernel sub-slice loop).
    out_f32 = ffnn_forward(x, params, compute_dtype=jnp.float32, sub_tile=256)
    jax.block_until_ready((out_bf16, out_f32))

    # Pure-JAX reference (PyTorch layout: y = x @ W.T + b).
    h = jnp.maximum(x @ params["w1"].T + params["b1"], 0.0)
    h = jnp.maximum(h @ params["w2"].T + params["b2"], 0.0)
    ref = jnp.squeeze(h @ params["w3"].T + params["b3"], axis=-1)

    assert out_f32.shape == (batch,) and out_bf16.shape == (batch,)
    assert jnp.allclose(out_f32, ref, atol=1e-4, rtol=1e-5), "f32 mismatch vs reference"
    assert jnp.allclose(out_bf16, ref, atol=3e-2, rtol=3e-2), "bf16 mismatch vs reference"

    print("KERNEL_OK")
</pallas_src>

<mosaic_0001>
module attributes {stable_mosaic.version = 11 : i64} {
  func.func @kernel(%arg0: i32, %arg1: memref<1024x16xf32, #tpu.memory_space<vmem>>, %arg2: memref<32x16xbf16, #tpu.memory_space<vmem>>, %arg3: memref<32x1xf32, #tpu.memory_space<vmem>>, %arg4: memref<32x32xbf16, #tpu.memory_space<vmem>>, %arg5: memref<32x1xf32, #tpu.memory_space<vmem>>, %arg6: memref<32x1xf32, #tpu.memory_space<vmem>>, %arg7: memref<1x1xf32, #tpu.memory_space<vmem>>, %arg8: memref<1x1x1024xf32, #tpu.memory_space<vmem>>) attributes {dimension_semantics = [#tpu.dimension_semantics<parallel>], iteration_bounds = array<i64: 4>, scalar_prefetch = 0 : i64, scratch_operands = 0 : i64, tpu.core_type = #tpu.core_type<tc>, window_params = [{transform_indices = @transform_0, window_bounds = array<i64: 1024, 16>}, {pipeline_mode = #tpu.pipeline_mode<synchronous>, transform_indices = @transform_1, window_bounds = array<i64: 32, 16>}, {pipeline_mode = #tpu.pipeline_mode<synchronous>, transform_indices = @transform_2, window_bounds = array<i64: 32, 1>}, {pipeline_mode = #tpu.pipeline_mode<synchronous>, transform_indices = @transform_3, window_bounds = array<i64: 32, 32>}, {pipeline_mode = #tpu.pipeline_mode<synchronous>, transform_indices = @transform_4, window_bounds = array<i64: 32, 1>}, {pipeline_mode = #tpu.pipeline_mode<synchronous>, transform_indices = @transform_5, window_bounds = array<i64: 32, 1>}, {pipeline_mode = #tpu.pipeline_mode<synchronous>, transform_indices = @transform_6, window_bounds = array<i64: 1, 1>}, {transform_indices = @transform_7, window_bounds = array<i64: 1, 1, 1024>}]} {
    %c0 = arith.constant 0 : index
    %c0_0 = arith.constant 0 : index
    %0 = vector.load %arg2[%c0, %c0_0] : memref<32x16xbf16, #tpu.memory_space<vmem>>, vector<32x16xbf16>
    %c0_1 = arith.constant 0 : index
    %c0_2 = arith.constant 0 : index
    %1 = vector.load %arg3[%c0_1, %c0_2] : memref<32x1xf32, #tpu.memory_space<vmem>>, vector<32x1xf32>
    %c0_3 = arith.constant 0 : index
    %c0_4 = arith.constant 0 : index
    %2 = vector.load %arg4[%c0_3, %c0_4] : memref<32x32xbf16, #tpu.memory_space<vmem>>, vector<32x32xbf16>
    %c0_5 = arith.constant 0 : index
    %c0_6 = arith.constant 0 : index
    %3 = vector.load %arg5[%c0_5, %c0_6] : memref<32x1xf32, #tpu.memory_space<vmem>>, vector<32x1xf32>
    %c0_7 = arith.constant 0 : index
    %c0_8 = arith.constant 0 : index
    %4 = vector.load %arg6[%c0_7, %c0_8] : memref<32x1xf32, #tpu.memory_space<vmem>>, vector<32x1xf32>
    %c0_9 = arith.constant 0 : index
    %c0_10 = arith.constant 0 : index
    %5 = vector.load %arg7[%c0_9, %c0_10] : memref<1x1xf32, #tpu.memory_space<vmem>>, vector<1x1xf32>
    %c0_11 = arith.constant 0 : index
    %c0_12 = arith.constant 0 : index
    %6 = vector.load %arg1[%c0_11, %c0_12] : memref<1024x16xf32, #tpu.memory_space<vmem>>, vector<1024x16xf32>
    %7 = arith.truncf %6 : vector<1024x16xf32> to vector<1024x16xbf16>
    %cst = arith.constant dense<0.000000e+00> : vector<32x1024xf32>
    %8 = tpu.matmul %0, %7, %cst {dimension_numbers = #tpu.dot_dimension_numbers<[1], [1], [0], [0], [0, 0, 1, 0], [], []>} : vector<32x16xbf16>, vector<1024x16xbf16>, vector<32x1024xf32> -> vector<32x1024xf32>
    %9 = vector.broadcast %1 : vector<32x1xf32> to vector<32x1024xf32>
    %10 = arith.addf %8, %9 : vector<32x1024xf32>
    %cst_13 = arith.constant 0.000000e+00 : f32
    %11 = vector.broadcast %cst_13 : f32 to vector<32x1024xf32>
    %12 = arith.maximumf %10, %11 : vector<32x1024xf32>
    %13 = arith.truncf %12 : vector<32x1024xf32> to vector<32x1024xbf16>
    %cst_14 = arith.constant dense<0.000000e+00> : vector<32x1024xf32>
    %14 = tpu.matmul %2, %13, %cst_14 {dimension_numbers = #tpu.dot_dimension_numbers<[1], [0], [0], [1], [0, 0, 1, 1], [], []>} : vector<32x32xbf16>, vector<32x1024xbf16>, vector<32x1024xf32> -> vector<32x1024xf32>
    %15 = vector.broadcast %3 : vector<32x1xf32> to vector<32x1024xf32>
    %16 = arith.addf %14, %15 : vector<32x1024xf32>
    %cst_15 = arith.constant 0.000000e+00 : f32
    %17 = vector.broadcast %cst_15 : f32 to vector<32x1024xf32>
    %18 = arith.maximumf %16, %17 : vector<32x1024xf32>
    %19 = vector.broadcast %4 : vector<32x1xf32> to vector<32x1024xf32>
    %20 = arith.mulf %18, %19 : vector<32x1024xf32>
    %cst_16 = arith.constant dense<0.000000e+00> : vector<1024xf32>
    %21 = vector.multi_reduction <add>, %20, %cst_16 [0] : vector<32x1024xf32> to vector<1024xf32>
    %22 = vector.shape_cast %21 : vector<1024xf32> to vector<1x1024xf32>
    %23 = vector.broadcast %5 : vector<1x1xf32> to vector<1x1024xf32>
    %24 = arith.addf %22, %23 : vector<1x1024xf32>
    %c0_17 = arith.constant 0 : index
    %c0_18 = arith.constant 0 : index
    %c0_19 = arith.constant 0 : index
    %25 = vector.load %arg8[%c0_17, %c0_18, %c0_19] : memref<1x1x1024xf32, #tpu.memory_space<vmem>>, vector<1x1x1024xf32>
    %26 = vector.shape_cast %25 : vector<1x1x1024xf32> to vector<1x1024xf32>
    %27 = vector.shape_cast %24 : vector<1x1024xf32> to vector<1x1x1024xf32>
    tpu.vector_store %arg8[%c0_17, %c0_18, %c0_19], %27 {strides = array<i32>} : memref<1x1x1024xf32, #tpu.memory_space<vmem>>, vector<1x1x1024xf32>,
    return
  }
  func.func @transform_0(%arg0: i32) -> (i32, i32) {
    %c0_i32 = arith.constant 0 : i32
    %c0_i32_0 = arith.constant 0 : i32
    return %arg0, %c0_i32 : i32, i32
  }
  func.func @transform_1(%arg0: i32) -> (i32, i32) {
    %c0_i32 = arith.constant 0 : i32
    %c0_i32_0 = arith.constant 0 : i32
    %c0_i32_1 = arith.constant 0 : i32
    return %c0_i32, %c0_i32_0 : i32, i32
  }
  func.func @transform_2(%arg0: i32) -> (i32, i32) {
    %c0_i32 = arith.constant 0 : i32
    %c0_i32_0 = arith.constant 0 : i32
    %c0_i32_1 = arith.constant 0 : i32
    return %c0_i32, %c0_i32_0 : i32, i32
  }
  func.func @transform_3(%arg0: i32) -> (i32, i32) {
    %c0_i32 = arith.constant 0 : i32
    %c0_i32_0 = arith.constant 0 : i32
    %c0_i32_1 = arith.constant 0 : i32
    return %c0_i32, %c0_i32_0 : i32, i32
  }
  func.func @transform_4(%arg0: i32) -> (i32, i32) {
    %c0_i32 = arith.constant 0 : i32
    %c0_i32_0 = arith.constant 0 : i32
    %c0_i32_1 = arith.constant 0 : i32
    return %c0_i32, %c0_i32_0 : i32, i32
  }
  func.func @transform_5(%arg0: i32) -> (i32, i32) {
    %c0_i32 = arith.constant 0 : i32
    %c0_i32_0 = arith.constant 0 : i32
    %c0_i32_1 = arith.constant 0 : i32
    return %c0_i32, %c0_i32_0 : i32, i32
  }
  func.func @transform_6(%arg0: i32) -> (i32, i32) {
    %c0_i32 = arith.constant 0 : i32
    %c0_i32_0 = arith.constant 0 : i32
    %c0_i32_1 = arith.constant 0 : i32
    return %c0_i32, %c0_i32_0 : i32, i32
  }
  func.func @transform_7(%arg0: i32) -> (i32, i32, i32) {
    %c0_i32 = arith.constant 0 : i32
    %c0_i32_0 = arith.constant 0 : i32
    %c0_i32_1 = arith.constant 0 : i32
    return %arg0, %c0_i32, %c0_i32_0 : i32, i32, i32
  }
}

</mosaic_0001>

<llo_original>
// kernel: tpu_custom_call.1
$region0: #{tpu_custom_call.1}
  #allocation0 [shape = 'u32[]', space=smem, size = 0x4, offset = 0x4, fixed_abs, tag = 'smem constant byte address 0x4 - core index']
  #allocation1 [shape = 'u32[144,128]{1,0:T(1,128)}', space=vmem, size = 0x12000, scoped, tag = 'internal scratch']
  #allocation2 [shape = 'f32[1,1]{1,0:T(1,128)S(1)}', space=vmem, size = 0x200, scoped, tag = 'scoped memory for tpu_custom_call.1']
  %s0 = inlined_call_operand.vmem [shape: f32[4096,16], index: 0, kind: input, shape index: {}]
  %s1 = inlined_call_operand.vmem [shape: bf16[32,16], index: 1, kind: input, shape index: {}]
  %s2 = inlined_call_operand.vmem [shape: f32[32,1], index: 2, kind: input, shape index: {}]
  %s3 = inlined_call_operand.vmem [shape: bf16[32,32], index: 3, kind: input, shape index: {}]
  %s4 = inlined_call_operand.vmem [shape: f32[32,1], index: 4, kind: input, shape index: {}]
  %s5 = inlined_call_operand.vmem [shape: f32[32,1], index: 5, kind: input, shape index: {}]
  %s6 = inlined_call_operand.<no memory space> [shape: f32[1,1], index: 6, kind: input, shape index: {}]
  %s7 = inlined_call_operand.hbm [shape: f32[4,1,1024], index: 7, kind: output, shape index: {}]
  %s8 = sld [smem:[#allocation0]]
  $region61: #{tpu_custom_call.1} parent=0
    _
  %s10 = ssub.s32 1, %s8
  %s11 = scalar_select 0, %s10, %s8
  %v12 = vstv %s6
  %13 = vst [vmem:[#allocation2] sm:$0x1] %v12
  $region1: #{tpu_custom_call.1} parent=0
    #allocation3 [shape = 'u8[8192]{0}', space=vmem, size = 0x2000, scoped, tag = 'output window, operand 0']
    #allocation4 [shape = 's32[2]{0}', space=sflag, size = 0x8, scoped, tag = 'scoped memory for tpu_custom_call.1']
    %14 = vsyncpa [#allocation4], 0
    %s15 = scalar_lea.sflag [#allocation4], 1
    %16 = vsyncpa %s15, 0
    loop: start=0, step=1, limit=6
    $region2: #{tpu_custom_call.1} parent=1 // loop_pre_header
      _
    $region3: #{tpu_custom_call.1} parent=1 // loop_header
      %s18 = sphi 0, %s22
      %p19 = scmp.ge.s32.totalorder %s18, 6
      %s28 = sphi 0, %s30
      %s31 = sphi 0, %s28
      %s32 = sphi 0, %s31
      %s48 = sphi 0, %s32
      %s52 = sphi 0, %s52
      %s54 = sphi 0, %s52
      %s55 = sphi 0, %s54
      %s69 = sphi 0, %s55
      %s73 = sphi 0, %s73
      %s75 = sphi 0, %s73
      %s76 = sphi 0, %s75
      %s90 = sphi 0, %s76
      %s94 = sphi 0, %s94
      %s96 = sphi 0, %s94
      %s97 = sphi 0, %s96
      %s111 = sphi 0, %s97
      %s115 = sphi 0, %s115
      %s117 = sphi 0, %s115
      %s118 = sphi 0, %s117
      %s132 = sphi 0, %s118
      %s136 = sphi 0, %s136
      %s138 = sphi 0, %s136
      %s139 = sphi 0, %s138
      %s153 = sphi 0, %s139
      %s157 = sphi 0, %s157
      %s159 = sphi 0, %s157
      %s160 = sphi 0, %s159
      %s174 = sphi 0, %s160
      %s180 = sphi 0, %s182
      %s183 = sphi 0, %s180
      %s184 = sphi 0, %s183
      %s200 = sphi 0, %s184
    $region4: #{tpu_custom_call.1} parent=1 // loop_header_branch
      %21 = sbr.rel (%p19) target = $region8
    $region5: #{tpu_custom_call.1} parent=1 // loop_body
      %s23 = ssub.s32 %s18, 1
      %s24 = ssub.s32 %s18, 2
      %s25 = sadd.s32 %s18, 1
      %s26 = ssub.s32 %s18, %s25
      %p27 = scmp.eq.s32.totalorder %s26, 0
      %s29 = sadd.s32 %s28, 1
      %s30 = scalar_select %p27, %s28, %s29
      %p33 = pneg %p27
      %p34 = scmp.eq.s32.totalorder %s18, 3
      %p35 = por %p33, %p34
      %p36 = scmp.ne.s32.totalorder %s28, %s31
      %p37 = scmp.eq.s32.totalorder %s18, 0
      %p38 = por %p36, %p37
      %p39 = scmp.ne.s32.totalorder %s28, %s31
      %p40 = scmp.eq.s32.totalorder %s23, 3
      %p41 = por %p39, %p40
      %p42 = scmp.ne.s32.totalorder %s31, %s32
      %p43 = scmp.eq.s32.totalorder %s23, 0
      %p44 = por %p42, %p43
      %p45 = scmp.ne.s32.totalorder %s31, %s32
      %p46 = scmp.eq.s32.totalorder %s24, 3
      %p47 = por %p45, %p46
      %p49 = scmp.ne.s32.totalorder %s32, %s48
      %p50 = scmp.eq.s32.totalorder %s24, 0
      %p51 = por %p49, %p50
      %s53 = sadd.s32 %s52, 1
      %p56 = scmp.eq.s32.totalorder %s18, 3
      %p57 = scmp.ne.s32.totalorder %s52, %s54
      %p58 = scmp.eq.s32.totalorder %s18, 0
      %p59 = por %p57, %p58
      %p60 = scmp.ne.s32.totalorder %s52, %s54
      %p61 = scmp.eq.s32.totalorder %s23, 3
      %p62 = por %p60, %p61
      %p63 = scmp.ne.s32.totalorder %s54, %s55
      %p64 = scmp.eq.s32.totalorder %s23, 0
      %p65 = por %p63, %p64
      %p66 = scmp.ne.s32.totalorder %s54, %s55
      %p67 = scmp.eq.s32.totalorder %s24, 3
      %p68 = por %p66, %p67
      %p70 = scmp.ne.s32.totalorder %s55, %s69
      %p71 = scmp.eq.s32.totalorder %s24, 0
      %p72 = por %p70, %p71
      %s74 = sadd.s32 %s73, 1
      %p77 = scmp.eq.s32.totalorder %s18, 3
      %p78 = scmp.ne.s32.totalorder %s73, %s75
      %p79 = scmp.eq.s32.totalorder %s18, 0
      %p80 = por %p78, %p79
      %p81 = scmp.ne.s32.totalorder %s73, %s75
      %p82 = scmp.eq.s32.totalorder %s23, 3
      %p83 = por %p81, %p82
      %p84 = scmp.ne.s32.totalorder %s75, %s76
      %p85 = scmp.eq.s32.totalorder %s23, 0
      %p86 = por %p84, %p85
      %p87 = scmp.ne.s32.totalorder %s75, %s76
      %p88 = scmp.eq.s32.totalorder %s24, 3
      %p89 = por %p87, %p88
      %p91 = scmp.ne.s32.totalorder %s76, %s90
      %p92 = scmp.eq.s32.totalorder %s24, 0
      %p93 = por %p91, %p92
      %s95 = sadd.s32 %s94, 1
      %p98 = scmp.eq.s32.totalorder %s18, 3
      %p99 = scmp.ne.s32.totalorder %s94, %s96
      %p100 = scmp.eq.s32.totalorder %s18, 0
      %p101 = por %p99, %p100
      %p102 = scmp.ne.s32.totalorder %s94, %s96
      %p103 = scmp.eq.s32.totalorder %s23, 3
      %p104 = por %p102, %p103
      %p105 = scmp.ne.s32.totalorder %s96, %s97
      %p106 = scmp.eq.s32.totalorder %s23, 0
      %p107 = por %p105, %p106
      %p108 = scmp.ne.s32.totalorder %s96, %s97
      %p109 = scmp.eq.s32.totalorder %s24, 3
      %p110 = por %p108, %p109
      %p112 = scmp.ne.s32.totalorder %s97, %s111
      %p113 = scmp.eq.s32.totalorder %s24, 0
      %p114 = por %p112, %p113
      %s116 = sadd.s32 %s115, 1
      %p119 = scmp.eq.s32.totalorder %s18, 3
      %p120 = scmp.ne.s32.totalorder %s115, %s117
      %p121 = scmp.eq.s32.totalorder %s18, 0
      %p122 = por %p120, %p121
      %p123 = scmp.ne.s32.totalorder %s115, %s117
      %p124 = scmp.eq.s32.totalorder %s23, 3
      %p125 = por %p123, %p124
      %p126 = scmp.ne.s32.totalorder %s117, %s118
      %p127 = scmp.eq.s32.totalorder %s23, 0
      %p128 = por %p126, %p127
      %p129 = scmp.ne.s32.totalorder %s117, %s118
      %p130 = scmp.eq.s32.totalorder %s24, 3
      %p131 = por %p129, %p130
      %p133 = scmp.ne.s32.totalorder %s118, %s132
      %p134 = scmp.eq.s32.totalorder %s24, 0
      %p135 = por %p133, %p134
      %s137 = sadd.s32 %s136, 1
      %p140 = scmp.eq.s32.totalorder %s18, 3
      %p141 = scmp.ne.s32.totalorder %s136, %s138
      %p142 = scmp.eq.s32.totalorder %s18, 0
      %p143 = por %p141, %p142
      %p144 = scmp.ne.s32.totalorder %s136, %s138
      %p145 = scmp.eq.s32.totalorder %s23, 3
      %p146 = por %p144, %p145
      %p147 = scmp.ne.s32.totalorder %s138, %s139
      %p148 = scmp.eq.s32.totalorder %s23, 0
      %p149 = por %p147, %p148
      %p150 = scmp.ne.s32.totalorder %s138, %s139
      %p151 = scmp.eq.s32.totalorder %s24, 3
      %p152 = por %p150, %p151
      %p154 = scmp.ne.s32.totalorder %s139, %s153
      %p155 = scmp.eq.s32.totalorder %s24, 0
      %p156 = por %p154, %p155
      %s158 = sadd.s32 %s157, 1
      %p161 = scmp.eq.s32.totalorder %s18, 3
      %p162 = scmp.ne.s32.totalorder %s157, %s159
      %p163 = scmp.eq.s32.totalorder %s18, 0
      %p164 = por %p162, %p163
      %p165 = scmp.ne.s32.totalorder %s157, %s159
      %p166 = scmp.eq.s32.totalorder %s23, 3
      %p167 = por %p165, %p166
      %p168 = scmp.ne.s32.totalorder %s159, %s160
      %p169 = scmp.eq.s32.totalorder %s23, 0
      %p170 = por %p168, %p169
      %p171 = scmp.ne.s32.totalorder %s159, %s160
      %p172 = scmp.eq.s32.totalorder %s24, 3
      %p173 = por %p171, %p172
      %p175 = scmp.ne.s32.totalorder %s160, %s174
      %p176 = scmp.eq.s32.totalorder %s24, 0
      %p177 = por %p175, %p176
      %s178 = ssub.s32 %s18, %s25
      %p179 = scmp.eq.s32.totalorder %s178, 0
      %s181 = sadd.s32 %s180, 1
      %s182 = scalar_select %p179, %s180, %s181
      %p185 = pneg %p179
      %p186 = scmp.eq.s32.totalorder %s18, 3
      %p187 = por %p185, %p186
      %p188 = scmp.ne.s32.totalorder %s180, %s183
      %p189 = scmp.eq.s32.totalorder %s18, 0
      %p190 = por %p188, %p189
      %p191 = scmp.ne.s32.totalorder %s180, %s183
      %p192 = scmp.eq.s32.totalorder %s23, 3
      %p193 = por %p191, %p192
      %p194 = scmp.ne.s32.totalorder %s183, %s184
      %p195 = scmp.eq.s32.totalorder %s23, 0
      %p196 = por %p194, %p195
      %p197 = scmp.ne.s32.totalorder %s183, %s184
      %p198 = scmp.eq.s32.totalorder %s24, 3
      %p199 = por %p197, %p198
      %p201 = scmp.ne.s32.totalorder %s184, %s200
      %p202 = scmp.eq.s32.totalorder %s24, 0
      %p203 = por %p201, %p202
      %p204 = scmp.le.s32.totalorder 1, %s18
      %p205 = scmp.lt.s32.totalorder %s18, 5
      %p206 = pnand %p204, %p205
      %p207 = pneg %p206
      // Predicated region
      $region9: #{tpu_custom_call.1} parent=5 // pred_check
        _
      $region10: #{tpu_custom_call.1} parent=5 // pred_check_branch
        %209 = sbr.rel (%p206) target = $region12
      $region11: #{tpu_custom_call.1} parent=5 // pred_region
        %s210 = ssub.s32 %s18, 1
        // Predicated region
        $region13: #{tpu_custom_call.1} parent=11 // pred_check
          %p211 = pneg %p65
        $region14: #{tpu_custom_call.1} parent=11 // pred_check_branch
          %213 = sbr.rel (%p211) target = $region16
        $region15: #{tpu_custom_call.1} parent=11 // pred_region
          _
        $region16: #{tpu_custom_call.1} parent=11 // pred_fallthru
          _
        // Predicated region
        $region17: #{tpu_custom_call.1} parent=11 // pred_check
          %p214 = pneg %p86
        $region18: #{tpu_custom_call.1} parent=11 // pred_check_branch
          %216 = sbr.rel (%p214) target = $region20
        $region19: #{tpu_custom_call.1} parent=11 // pred_region
          _
        $region20: #{tpu_custom_call.1} parent=11 // pred_fallthru
          _
        // Predicated region
        $region21: #{tpu_custom_call.1} parent=11 // pred_check
          %p217 = pneg %p107
        $region22: #{tpu_custom_call.1} parent=11 // pred_check_branch
          %219 = sbr.rel (%p217) target = $region24
        $region23: #{tpu_custom_call.1} parent=11 // pred_region
          _
        $region24: #{tpu_custom_call.1} parent=11 // pred_fallthru
          _
        // Predicated region
        $region25: #{tpu_custom_call.1} parent=11 // pred_check
          %p220 = pneg %p128
        $region26: #{tpu_custom_call.1} parent=11 // pred_check_branch
          %222 = sbr.rel (%p220) target = $region28
        $region27: #{tpu_custom_call.1} parent=11 // pred_region
          _
        $region28: #{tpu_custom_call.1} parent=11 // pred_fallthru
          _
        // Predicated region
        $region29: #{tpu_custom_call.1} parent=11 // pred_check
          %p223 = pneg %p149
        $region30: #{tpu_custom_call.1} parent=11 // pred_check_branch
          %225 = sbr.rel (%p223) target = $region32
        $region31: #{tpu_custom_call.1} parent=11 // pred_region
          _
        $region32: #{tpu_custom_call.1} parent=11 // pred_fallthru
          _
        // Predicated region
        $region33: #{tpu_custom_call.1} parent=11 // pred_check
          %p226 = pneg %p170
        $region34: #{tpu_custom_call.1} parent=11 // pred_check_branch
          %228 = sbr.rel (%p226) target = $region36
        $region35: #{tpu_custom_call.1} parent=11 // pred_region
          _
        $region36: #{tpu_custom_call.1} parent=11 // pred_fallthru
          _
      $region12: #{tpu_custom_call.1} parent=5 // pred_fallthru
        _
      %p229 = scmp.lt.s32.totalorder %s18, 4
      // Predicated region
      $region37: #{tpu_custom_call.1} parent=5 // pred_check
        %p230 = pneg %p229
      $region38: #{tpu_custom_call.1} parent=5 // pred_check_branch
        %232 = sbr.rel (%p230) target = $region40
      $region39: #{tpu_custom_call.1} parent=5 // pred_region
        // Predicated region
        $region41: #{tpu_custom_call.1} parent=39 // pred_check
          %p233 = pneg %p38
        $region42: #{tpu_custom_call.1} parent=39 // pred_check_branch
          %235 = sbr.rel (%p233) target = $region44
        $region43: #{tpu_custom_call.1} parent=39 // pred_region
          %s236 = smul.u32 128, %s18
          %p237 = scmp.lt.s32.totalorder %s236, 511
          %s238 = scalar_select %p237, %s236, 511
          %s239 = smul.addr %s238, 8
          %s240 = scalar_lea.vmem %s0, %s239
          %s241 = smul.u32 128, %s18
        $region44: #{tpu_custom_call.1} parent=39 // pred_fallthru
          _
      $region40: #{tpu_custom_call.1} parent=5 // pred_fallthru
        _
      %p242 = scmp.le.s32.totalorder 1, %s18
      %p243 = scmp.lt.s32.totalorder %s18, 5
      %p244 = pnand %p242, %p243
      %p245 = pneg %p244
      // Predicated region
      $region45: #{tpu_custom_call.1} parent=5 // pred_check
        _
      $region46: #{tpu_custom_call.1} parent=5 // pred_check_branch
        %247 = sbr.rel (%p244) target = $region48
      $region47: #{tpu_custom_call.1} parent=5 // pred_region
        %s248 = ssub.s32 %s18, 1
        %s249 = smul.u32 128, %s23
        %p250 = scmp.lt.s32.totalorder %s249, 511
        %s251 = scalar_select %p250, %s249, 511
        %s252 = smul.addr %s251, 8
        %s253 = scalar_lea.vmem %s0, %s252
        %p254 = pneg %p44
        %p255 = pneg %p41
        %p256 = pneg %p65
        %p257 = pneg %p62
        %p258 = pneg %p86
        %p259 = pneg %p83
        %p260 = pneg %p107
        %p261 = pneg %p104
        %p262 = pneg %p128
        %p263 = pneg %p125
        %p264 = pneg %p149
        %p265 = pneg %p146
        %p266 = pneg %p170
        %p267 = pneg %p167
        %p268 = pneg %p196
        %p269 = pneg %p193
        %s270 = sand.u32 %s183, 1
        %s271 = scalar_lea.sflag [#allocation4], %s270
        %s272 = sand.u32 %s183, 1
        %s273 = smul.addr %s272, 8
        %s274 = scalar_lea.vmem [#allocation3], %s273
        %s275 = smul.u32 128, %s23
        %p276 = scmp.lt.s32.totalorder %s275, 511
        %s277 = scalar_select %p276, %s275, 511
        %s278 = smul.addr %s277, 8
        %s279 = scalar_lea.vmem %s0, %s278
        %s280 = smul.u32 128, %s23
        %v282 = vld [vmem:[%s1] sm:$0xf]
        %v283 = vld [vmem:[%s1 + $0x4] sm:$0xf]
        %v284 = vld [vmem:[%s1 + $0x8] sm:$0xf]
        %v285 = vld [vmem:[%s1 + $0xc] sm:$0xf]
        %v286 = vld [vmem:[%s2] sm:$0xff]
        %v287 = vld [vmem:[%s2 + $0x8] sm:$0xff]
        %v288 = vld [vmem:[%s2 + $0x10] sm:$0xff]
        %v289 = vld [vmem:[%s2 + $0x18] sm:$0xff]
        %v290 = vld [vmem:[%s3] sm:$0xf]
        %v291 = vld [vmem:[%s3 + $0x4] sm:$0xf]
        %v292 = vld [vmem:[%s3 + $0x8] sm:$0xf]
        %v293 = vld [vmem:[%s3 + $0xc] sm:$0xf]
        %v294 = vld [vmem:[%s4] sm:$0xff]
        %v295 = vld [vmem:[%s4 + $0x8] sm:$0xff]
        %v296 = vld [vmem:[%s4 + $0x10] sm:$0xff]
        %v297 = vld [vmem:[%s4 + $0x18] sm:$0xff]
        %v298 = vld [vmem:[%s5] sm:$0xff]
        %v299 = vld [vmem:[%s5 + $0x8] sm:$0xff]
        %v300 = vld [vmem:[%s5 + $0x10] sm:$0xff]
        %v301 = vld [vmem:[%s5 + $0x18] sm:$0xff]
        %v302 = vld [vmem:[#allocation2] sm:$0x1]
        %v303 = vld [vmem:[%s279] sm:$0xff]
        %v304 = vld [vmem:[%s279 + $0x8] sm:$0xff]
        %v305 = vld [vmem:[%s279 + $0x10] sm:$0xff]
        %v306 = vld [vmem:[%s279 + $0x18] sm:$0xff]
        %v307 = vld [vmem:[%s279 + $0x20] sm:$0xff]
        %v308 = vld [vmem:[%s279 + $0x28] sm:$0xff]
        %v309 = vld [vmem:[%s279 + $0x30] sm:$0xff]
        %v310 = vld [vmem:[%s279 + $0x38] sm:$0xff]
        %v311 = vld [vmem:[%s279 + $0x40] sm:$0xff]
        %v312 = vld [vmem:[%s279 + $0x48] sm:$0xff]
        %v313 = vld [vmem:[%s279 + $0x50] sm:$0xff]
        %v314 = vld [vmem:[%s279 + $0x58] sm:$0xff]
        %v315 = vld [vmem:[%s279 + $0x60] sm:$0xff]
        %v316 = vld [vmem:[%s279 + $0x68] sm:$0xff]
        %v317 = vld [vmem:[%s279 + $0x70] sm:$0xff]
        %v318 = vld [vmem:[%s279 + $0x78] sm:$0xff]
        %v319 = vld [vmem:[%s279 + $0x80] sm:$0xff]
        %v320 = vld [vmem:[%s279 + $0x88] sm:$0xff]
        %v321 = vld [vmem:[%s279 + $0x90] sm:$0xff]
        %v322 = vld [vmem:[%s279 + $0x98] sm:$0xff]
        %v323 = vld [vmem:[%s279 + $0xa0] sm:$0xff]
        %v324 = vld [vmem:[%s279 + $0xa8] sm:$0xff]
        %v325 = vld [vmem:[%s279 + $0xb0] sm:$0xff]
        %v326 = vld [vmem:[%s279 + $0xb8] sm:$0xff]
        %v327 = vld [vmem:[%s279 + $0xc0] sm:$0xff]
        %v328 = vld [vmem:[%s279 + $0xc8] sm:$0xff]
        %v329 = vld [vmem:[%s279 + $0xd0] sm:$0xff]
        %v330 = vld [vmem:[%s279 + $0xd8] sm:$0xff]
        %v331 = vld [vmem:[%s279 + $0xe0] sm:$0xff]
        %v332 = vld [vmem:[%s279 + $0xe8] sm:$0xff]
        %v333 = vld [vmem:[%s279 + $0xf0] sm:$0xff]
        %v334 = vld [vmem:[%s279 + $0xf8] sm:$0xff]
        %v335 = vld [vmem:[%s279 + $0x100] sm:$0xff]
        %v336 = vld [vmem:[%s279 + $0x108] sm:$0xff]
        %v337 = vld [vmem:[%s279 + $0x110] sm:$0xff]
        %v338 = vld [vmem:[%s279 + $0x118] sm:$0xff]
        %v339 = vld [vmem:[%s279 + $0x120] sm:$0xff]
        %v340 = vld [vmem:[%s279 + $0x128] sm:$0xff]
        %v341 = vld [vmem:[%s279 + $0x130] sm:$0xff]
        %v342 = vld [vmem:[%s279 + $0x138] sm:$0xff]
        %v343 = vld [vmem:[%s279 + $0x140] sm:$0xff]
        %v344 = vld [vmem:[%s279 + $0x148] sm:$0xff]
        %v345 = vld [vmem:[%s279 + $0x150] sm:$0xff]
        %v346 = vld [vmem:[%s279 + $0x158] sm:$0xff]
        %v347 = vld [vmem:[%s279 + $0x160] sm:$0xff]
        %v348 = vld [vmem:[%s279 + $0x168] sm:$0xff]
        %v349 = vld [vmem:[%s279 + $0x170] sm:$0xff]
        %v350 = vld [vmem:[%s279 + $0x178] sm:$0xff]
        %v351 = vld [vmem:[%s279 + $0x180] sm:$0xff]
        %v352 = vld [vmem:[%s279 + $0x188] sm:$0xff]
        %v353 = vld [vmem:[%s279 + $0x190] sm:$0xff]
        %v354 = vld [vmem:[%s279 + $0x198] sm:$0xff]
        %v355 = vld [vmem:[%s279 + $0x1a0] sm:$0xff]
        %v356 = vld [vmem:[%s279 + $0x1a8] sm:$0xff]
        %v357 = vld [vmem:[%s279 + $0x1b0] sm:$0xff]
        %v358 = vld [vmem:[%s279 + $0x1b8] sm:$0xff]
        %v359 = vld [vmem:[%s279 + $0x1c0] sm:$0xff]
        %v360 = vld [vmem:[%s279 + $0x1c8] sm:$0xff]
        %v361 = vld [vmem:[%s279 + $0x1d0] sm:$0xff]
        %v362 = vld [vmem:[%s279 + $0x1d8] sm:$0xff]
        %v363 = vld [vmem:[%s279 + $0x1e0] sm:$0xff]
        %v364 = vld [vmem:[%s279 + $0x1e8] sm:$0xff]
        %v365 = vld [vmem:[%s279 + $0x1f0] sm:$0xff]
        %v366 = vld [vmem:[%s279 + $0x1f8] sm:$0xff]
        %v367 = vld [vmem:[%s279 + $0x200] sm:$0xff]
        %v368 = vld [vmem:[%s279 + $0x208] sm:$0xff]
        %v369 = vld [vmem:[%s279 + $0x210] sm:$0xff]
        %v370 = vld [vmem:[%s279 + $0x218] sm:$0xff]
        %v371 = vld [vmem:[%s279 + $0x220] sm:$0xff]
        %v372 = vld [vmem:[%s279 + $0x228] sm:$0xff]
        %v373 = vld [vmem:[%s279 + $0x230] sm:$0xff]
        %v374 = vld [vmem:[%s279 + $0x238] sm:$0xff]
        %v375 = vld [vmem:[%s279 + $0x240] sm:$0xff]
        %v376 = vld [vmem:[%s279 + $0x248] sm:$0xff]
        %v377 = vld [vmem:[%s279 + $0x250] sm:$0xff]
        %v378 = vld [vmem:[%s279 + $0x258] sm:$0xff]
        %v379 = vld [vmem:[%s279 + $0x260] sm:$0xff]
        %v380 = vld [vmem:[%s279 + $0x268] sm:$0xff]
        %v381 = vld [vmem:[%s279 + $0x270] sm:$0xff]
        %v382 = vld [vmem:[%s279 + $0x278] sm:$0xff]
        %v383 = vld [vmem:[%s279 + $0x280] sm:$0xff]
        %v384 = vld [vmem:[%s279 + $0x288] sm:$0xff]
        %v385 = vld [vmem:[%s279 + $0x290] sm:$0xff]
        %v386 = vld [vmem:[%s279 + $0x298] sm:$0xff]
        %v387 = vld [vmem:[%s279 + $0x2a0] sm:$0xff]
        %v388 = vld [vmem:[%s279 + $0x2a8] sm:$0xff]
        %v389 = vld [vmem:[%s279 + $0x2b0] sm:$0xff]
        %v390 = vld [vmem:[%s279 + $0x2b8] sm:$0xff]
        %v391 = vld [vmem:[%s279 + $0x2c0] sm:$0xff]
        %v392 = vld [vmem:[%s279 + $0x2c8] sm:$0xff]
        %v393 = vld [vmem:[%s279 + $0x2d0] sm:$0xff]
        %v394 = vld [vmem:[%s279 + $0x2d8] sm:$0xff]
        %v395 = vld [vmem:[%s279 + $0x2e0] sm:$0xff]
        %v396 = vld [vmem:[%s279 + $0x2e8] sm:$0xff]
        %v397 = vld [vmem:[%s279 + $0x2f0] sm:$0xff]
        %v398 = vld [vmem:[%s279 + $0x2f8] sm:$0xff]
        %v399 = vld [vmem:[%s279 + $0x300] sm:$0xff]
        %v400 = vld [vmem:[%s279 + $0x308] sm:$0xff]
        %v401 = vld [vmem:[%s279 + $0x310] sm:$0xff]
        %v402 = vld [vmem:[%s279 + $0x318] sm:$0xff]
        %v403 = vld [vmem:[%s279 + $0x320] sm:$0xff]
        %v404 = vld [vmem:[%s279 + $0x328] sm:$0xff]
        %v405 = vld [vmem:[%s279 + $0x330] sm:$0xff]
        %v406 = vld [vmem:[%s279 + $0x338] sm:$0xff]
        %v407 = vld [vmem:[%s279 + $0x340] sm:$0xff]
        %v408 = vld [vmem:[%s279 + $0x348] sm:$0xff]
        %v409 = vld [vmem:[%s279 + $0x350] sm:$0xff]
        %v410 = vld [vmem:[%s279 + $0x358] sm:$0xff]
        %v411 = vld [vmem:[%s279 + $0x360] sm:$0xff]
        %v412 = vld [vmem:[%s279 + $0x368] sm:$0xff]
        %v413 = vld [vmem:[%s279 + $0x370] sm:$0xff]
        %v414 = vld [vmem:[%s279 + $0x378] sm:$0xff]
        %v415 = vld [vmem:[%s279 + $0x380] sm:$0xff]
        %v416 = vld [vmem:[%s279 + $0x388] sm:$0xff]
        %v417 = vld [vmem:[%s279 + $0x390] sm:$0xff]
        %v418 = vld [vmem:[%s279 + $0x398] sm:$0xff]
        %v419 = vld [vmem:[%s279 + $0x3a0] sm:$0xff]
        %v420 = vld [vmem:[%s279 + $0x3a8] sm:$0xff]
        %v421 = vld [vmem:[%s279 + $0x3b0] sm:$0xff]
        %v422 = vld [vmem:[%s279 + $0x3b8] sm:$0xff]
        %v423 = vld [vmem:[%s279 + $0x3c0] sm:$0xff]
        %v424 = vld [vmem:[%s279 + $0x3c8] sm:$0xff]
        %v425 = vld [vmem:[%s279 + $0x3d0] sm:$0xff]
        %v426 = vld [vmem:[%s279 + $0x3d8] sm:$0xff]
        %v427 = vld [vmem:[%s279 + $0x3e0] sm:$0xff]
        %v428 = vld [vmem:[%s279 + $0x3e8] sm:$0xff]
        %v429 = vld [vmem:[%s279 + $0x3f0] sm:$0xff]
        %v430 = vld [vmem:[%s279 + $0x3f8] sm:$0xff]
        %v431 = vpack.c.bf16 %v304, %v303
        %v432 = vpack.c.bf16 %v306, %v305
        %v433 = vpack.c.bf16 %v308, %v307
        %v434 = vpack.c.bf16 %v310, %v309
        %v435 = vpack.c.bf16 %v312, %v311
        %v436 = vpack.c.bf16 %v314, %v313
        %v437 = vpack.c.bf16 %v316, %v315
        %v438 = vpack.c.bf16 %v318, %v317
        %v439 = vpack.c.bf16 %v320, %v319
        %v440 = vpack.c.bf16 %v322, %v321
        %v441 = vpack.c.bf16 %v324, %v323
        %v442 = vpack.c.bf16 %v326, %v325
        %v443 = vpack.c.bf16 %v328, %v327
        %v444 = vpack.c.bf16 %v330, %v329
        %v445 = vpack.c.bf16 %v332, %v331
        %v446 = vpack.c.bf16 %v334, %v333
        %v447 = vpack.c.bf16 %v336, %v335
        %v448 = vpack.c.bf16 %v338, %v337
        %v449 = vpack.c.bf16 %v340, %v339
        %v450 = vpack.c.bf16 %v342, %v341
        %v451 = vpack.c.bf16 %v344, %v343
        %v452 = vpack.c.bf16 %v346, %v345
        %v453 = vpack.c.bf16 %v348, %v347
        %v454 = vpack.c.bf16 %v350, %v349
        %v455 = vpack.c.bf16 %v352, %v351
        %v456 = vpack.c.bf16 %v354, %v353
        %v457 = vpack.c.bf16 %v356, %v355
        %v458 = vpack.c.bf16 %v358, %v357
        %v459 = vpack.c.bf16 %v360, %v359
        %v460 = vpack.c.bf16 %v362, %v361
        %v461 = vpack.c.bf16 %v364, %v363
        %v462 = vpack.c.bf16 %v366, %v365
        %v463 = vpack.c.bf16 %v368, %v367
        %v464 = vpack.c.bf16 %v370, %v369
        %v465 = vpack.c.bf16 %v372, %v371
        %v466 = vpack.c.bf16 %v374, %v373
        %v467 = vpack.c.bf16 %v376, %v375
        %v468 = vpack.c.bf16 %v378, %v377
        %v469 = vpack.c.bf16 %v380, %v379
        %v470 = vpack.c.bf16 %v382, %v381
        %v471 = vpack.c.bf16 %v384, %v383
        %v472 = vpack.c.bf16 %v386, %v385
        %v473 = vpack.c.bf16 %v388, %v387
        %v474 = vpack.c.bf16 %v390, %v389
        %v475 = vpack.c.bf16 %v392, %v391
        %v476 = vpack.c.bf16 %v394, %v393
        %v477 = vpack.c.bf16 %v396, %v395
        %v478 = vpack.c.bf16 %v398, %v397
        %v479 = vpack.c.bf16 %v400, %v399
        %v480 = vpack.c.bf16 %v402, %v401
        %v481 = vpack.c.bf16 %v404, %v403
        %v482 = vpack.c.bf16 %v406, %v405
        %v483 = vpack.c.bf16 %v408, %v407
        %v484 = vpack.c.bf16 %v410, %v409
        %v485 = vpack.c.bf16 %v412, %v411
        %v486 = vpack.c.bf16 %v414, %v413
        %v487 = vpack.c.bf16 %v416, %v415
        %v488 = vpack.c.bf16 %v418, %v417
        %v489 = vpack.c.bf16 %v420, %v419
        %v490 = vpack.c.bf16 %v422, %v421
        %v491 = vpack.c.bf16 %v424, %v423
        %v492 = vpack.c.bf16 %v426, %v425
        %v493 = vpack.c.bf16 %v428, %v427
        %v494 = vpack.c.bf16 %v430, %v429
        %496 = vset.pattern.permute.xlu0 0
        %497 = vperm.xlu0 %496, %v286
        %v498 = vpop.permute.xlu0 %497
        %501 = vset.pattern.permute.xlu0 0
        %502 = vperm.xlu0 %501, %v287
        %v503 = vpop.permute.xlu0 %502
        %506 = vset.pattern.permute.xlu0 0
        %507 = vperm.xlu0 %506, %v288
        %v508 = vpop.permute.xlu0 %507
        %511 = vset.pattern.permute.xlu0 0
        %512 = vperm.xlu0 %511, %v289
        %v513 = vpop.permute.xlu0 %512
        %v519 = vunpack.c.l.b16 %v282
        %v520 = vunpack.c.l.b16 %v283
        %v521 = vunpack.c.l.b16 %v284
        %v522 = vunpack.c.l.b16 %v285
        %v523 = vpack.c.b16 %v520, %v519
        %v524 = vpack.c.b16 %v522, %v521
        %vm525 = vcmask 130048
        %v527 = vsel %vm525, %v523, 0
        %v530 = vsel %vm525, %v524, 0
        %v533 = vsel %vm525, %v431, 0
        %v536 = vsel %vm525, %v432, 0
        %v539 = vsel %vm525, %v433, 0
        %v542 = vsel %vm525, %v434, 0
        %v545 = vsel %vm525, %v435, 0
        %v548 = vsel %vm525, %v436, 0
        %v551 = vsel %vm525, %v437, 0
        %v554 = vsel %vm525, %v438, 0
        %v557 = vsel %vm525, %v439, 0
        %v560 = vsel %vm525, %v440, 0
        %v563 = vsel %vm525, %v441, 0
        %v566 = vsel %vm525, %v442, 0
        %v569 = vsel %vm525, %v443, 0
        %v572 = vsel %vm525, %v444, 0
        %v575 = vsel %vm525, %v445, 0
        %v578 = vsel %vm525, %v446, 0
        %v581 = vsel %vm525, %v447, 0
        %v584 = vsel %vm525, %v448, 0
        %v587 = vsel %vm525, %v449, 0
        %v590 = vsel %vm525, %v450, 0
        %v593 = vsel %vm525, %v451, 0
        %v596 = vsel %vm525, %v452, 0
        %v599 = vsel %vm525, %v453, 0
        %v602 = vsel %vm525, %v454, 0
        %v605 = vsel %vm525, %v455, 0
        %v608 = vsel %vm525, %v456, 0
        %v611 = vsel %vm525, %v457, 0
        %v614 = vsel %vm525, %v458, 0
        %v617 = vsel %vm525, %v459, 0
        %v620 = vsel %vm525, %v460, 0
        %v623 = vsel %vm525, %v461, 0
        %v626 = vsel %vm525, %v462, 0
        %v629 = vsel %vm525, %v463, 0
        %v632 = vsel %vm525, %v464, 0
        %v635 = vsel %vm525, %v465, 0
        %v638 = vsel %vm525, %v466, 0
        %v641 = vsel %vm525, %v467, 0
        %v644 = vsel %vm525, %v468, 0
        %v647 = vsel %vm525, %v469, 0
        %v650 = vsel %vm525, %v470, 0
        %v653 = vsel %vm525, %v471, 0
        %v656 = vsel %vm525, %v472, 0
        %v659 = vsel %vm525, %v473, 0
        %v662 = vsel %vm525, %v474, 0
        %v665 = vsel %vm525, %v475, 0
        %v668 = vsel %vm525, %v476, 0
        %v671 = vsel %vm525, %v477, 0
        %v674 = vsel %vm525, %v478, 0
        %v677 = vsel %vm525, %v479, 0
        %v680 = vsel %vm525, %v480, 0
        %v683 = vsel %vm525, %v481, 0
        %v686 = vsel %vm525, %v482, 0
        %v689 = vsel %vm525, %v483, 0
        %v692 = vsel %vm525, %v484, 0
        %v695 = vsel %vm525, %v485, 0
        %v698 = vsel %vm525, %v486, 0
        %v701 = vsel %vm525, %v487, 0
        %v704 = vsel %vm525, %v488, 0
        %v707 = vsel %vm525, %v489, 0
        %v710 = vsel %vm525, %v490, 0
        %v713 = vsel %vm525, %v491, 0
        %v716 = vsel %vm525, %v492, 0
        %v719 = vsel %vm525, %v493, 0
        %v722 = vsel %vm525, %v494, 0
        %724 = vmatprep.subr.bf16.mxu0 0
        %725 = vmatpush1.bf16.xpose.msra.mxu0 %v554
        %726 = vmatprep.subr.bf16.mxu0 0
        %727 = vmatpush1.bf16.xpose.msra.mxu0 %v551
        %728 = vmatprep.subr.bf16.mxu0 0
        %729 = vmatpush1.bf16.xpose.msra.mxu0 %v548
        %730 = vmatprep.subr.bf16.mxu0 0
        %731 = vmatpush1.bf16.xpose.msra.mxu0 %v545
        %732 = vmatprep.subr.bf16.mxu0 0
        %733 = vmatpush1.bf16.xpose.msra.mxu0 %v542
        %734 = vmatprep.subr.bf16.mxu0 0
        %735 = vmatpush1.bf16.xpose.msra.mxu0 %v539
        %736 = vmatprep.subr.bf16.mxu0 0
        %737 = vmatpush1.bf16.xpose.msra.mxu0 %v536
        %738 = vmatprep.subr.bf16.mxu0 0
        %739 = vmatpush1.bf16.xpose.msra.mxu0 %v533
        %740 = vmatprep.subr.bf16.mxu0 0
        %741 = vmatpush2.bf16.xpose.msra.mxu0 %v578
        %742 = vmatprep.subr.bf16.mxu0 0
        %743 = vmatpush2.bf16.xpose.msra.mxu0 %v575
        %744 = vmatprep.subr.bf16.mxu0 0
        %745 = vmatpush2.bf16.xpose.msra.mxu0 %v572
        %746 = vmatprep.subr.bf16.mxu0 0
        %747 = vmatpush2.bf16.xpose.msra.mxu0 %v569
        %748 = vmatprep.subr.bf16.mxu0 0
        %749 = vmatpush2.bf16.xpose.msra.mxu0 %v566
        %750 = vmatprep.subr.bf16.mxu0 0
        %751 = vmatpush2.bf16.xpose.msra.mxu0 %v563
        %752 = vmatprep.subr.bf16.mxu0 0
        %753 = vmatpush2.bf16.xpose.msra.mxu0 %v560
        %754 = vmatprep.subr.bf16.mxu0 0
        %755 = vmatpush2.bf16.xpose.msra.mxu0 %v557
        %756 = vmatprep.mubr.bf16.mxu0 0
        %757 = vmatmul.mubr.bf16.gmra.mxu0 %v527
        %v758 = vpop.f32.mrf.mxu0
        %v759 = vadd.f32 %v498, %v758
        %v760 = vpop.f32.mrf.mxu0
        %v761 = vadd.f32 %v498, %v760
        %v762 = vpop.f32.mrf.mxu0
        %v763 = vadd.f32 %v503, %v762
        %v764 = vpop.f32.mrf.mxu0
        %v765 = vadd.f32 %v503, %v764
        %766 = vmatprep.mubr.bf16.mxu0 0
        %767 = vmatmul.mubr.bf16.gmra.mxu0 %v530
        %v768 = vpop.f32.mrf.mxu0
        %v769 = vadd.f32 %v508, %v768
        %v770 = vpop.f32.mrf.mxu0
        %v771 = vadd.f32 %v508, %v770
        %v772 = vpop.f32.mrf.mxu0
        %v773 = vadd.f32 %v513, %v772
        %v774 = vpop.f32.mrf.mxu0
        %v775 = vadd.f32 %v513, %v774
        %776 = vdwg.mxu0
        %777 = vmatprep.subr.bf16.mxu0 0
        %778 = vmatpush1.bf16.xpose.msra.mxu0 %v602
        %779 = vmatprep.subr.bf16.mxu0 0
        %780 = vmatpush1.bf16.xpose.msra.mxu0 %v599
        %781 = vmatprep.subr.bf16.mxu0 0
        %782 = vmatpush1.bf16.xpose.msra.mxu0 %v596
        %783 = vmatprep.subr.bf16.mxu0 0
        %784 = vmatpush1.bf16.xpose.msra.mxu0 %v593
        %785 = vmatprep.subr.bf16.mxu0 0
        %786 = vmatpush1.bf16.xpose.msra.mxu0 %v590
        %787 = vmatprep.subr.bf16.mxu0 0
        %788 = vmatpush1.bf16.xpose.msra.mxu0 %v587
        %789 = vmatprep.subr.bf16.mxu0 0
        %790 = vmatpush1.bf16.xpose.msra.mxu0 %v584
        %791 = vmatprep.subr.bf16.mxu0 0
        %792 = vmatpush1.bf16.xpose.msra.mxu0 %v581
        %793 = vmatprep.subr.bf16.mxu0 0
        %794 = vmatpush2.bf16.xpose.msra.mxu0 %v626
        %795 = vmatprep.subr.bf16.mxu0 0
        %796 = vmatpush2.bf16.xpose.msra.mxu0 %v623
        %797 = vmatprep.subr.bf16.mxu0 0
        %798 = vmatpush2.bf16.xpose.msra.mxu0 %v620
        %799 = vmatprep.subr.bf16.mxu0 0
        %800 = vmatpush2.bf16.xpose.msra.mxu0 %v617
        %801 = vmatprep.subr.bf16.mxu0 0
        %802 = vmatpush2.bf16.xpose.msra.mxu0 %v614
        %803 = vmatprep.subr.bf16.mxu0 0
        %804 = vmatpush2.bf16.xpose.msra.mxu0 %v611
        %805 = vmatprep.subr.bf16.mxu0 0
        %806 = vmatpush2.bf16.xpose.msra.mxu0 %v608
        %807 = vmatprep.subr.bf16.mxu0 0
        %808 = vmatpush2.bf16.xpose.msra.mxu0 %v605
        %809 = vmatprep.mubr.bf16.mxu0 0
        %810 = vmatmul.mubr.bf16.gmra.mxu0 %v527
        %v811 = vpop.f32.mrf.mxu0
        %v812 = vadd.f32 %v498, %v811
        %v813 = vpop.f32.mrf.mxu0
        %v814 = vadd.f32 %v498, %v813
        %v815 = vpop.f32.mrf.mxu0
        %v816 = vadd.f32 %v503, %v815
        %v817 = vpop.f32.mrf.mxu0
        %v818 = vadd.f32 %v503, %v817
        %819 = vmatprep.mubr.bf16.mxu0 0
        %820 = vmatmul.mubr.bf16.gmra.mxu0 %v530
        %v821 = vpop.f32.mrf.mxu0
        %v822 = vadd.f32 %v508, %v821
        %v823 = vpop.f32.mrf.mxu0
        %v824 = vadd.f32 %v508, %v823
        %v825 = vpop.f32.mrf.mxu0
        %v826 = vadd.f32 %v513, %v825
        %v827 = vpop.f32.mrf.mxu0
        %v828 = vadd.f32 %v513, %v827
        %829 = vdwg.mxu0
        %830 = vmatprep.subr.bf16.mxu0 0
        %831 = vmatpush1.bf16.xpose.msra.mxu0 %v650
        %832 = vmatprep.subr.bf16.mxu0 0
        %833 = vmatpush1.bf16.xpose.msra.mxu0 %v647
        %834 = vmatprep.subr.bf16.mxu0 0
        %835 = vmatpush1.bf16.xpose.msra.mxu0 %v644
        %836 = vmatprep.subr.bf16.mxu0 0
        %837 = vmatpush1.bf16.xpose.msra.mxu0 %v641
        %838 = vmatprep.subr.bf16.mxu0 0
        %839 = vmatpush1.bf16.xpose.msra.mxu0 %v638
        %840 = vmatprep.subr.bf16.mxu0 0
        %841 = vmatpush1.bf16.xpose.msra.mxu0 %v635
        %842 = vmatprep.subr.bf16.mxu0 0
        %843 = vmatpush1.bf16.xpose.msra.mxu0 %v632
        %844 = vmatprep.subr.bf16.mxu0 0
        %845 = vmatpush1.bf16.xpose.msra.mxu0 %v629
        %846 = vmatprep.subr.bf16.mxu0 0
        %847 = vmatpush2.bf16.xpose.msra.mxu0 %v674
        %848 = vmatprep.subr.bf16.mxu0 0
        %849 = vmatpush2.bf16.xpose.msra.mxu0 %v671
        %850 = vmatprep.subr.bf16.mxu0 0
        %851 = vmatpush2.bf16.xpose.msra.mxu0 %v668
        %852 = vmatprep.subr.bf16.mxu0 0
        %853 = vmatpush2.bf16.xpose.msra.mxu0 %v665
        %854 = vmatprep.subr.bf16.mxu0 0
        %855 = vmatpush2.bf16.xpose.msra.mxu0 %v662
        %856 = vmatprep.subr.bf16.mxu0 0
        %857 = vmatpush2.bf16.xpose.msra.mxu0 %v659
        %858 = vmatprep.subr.bf16.mxu0 0
        %859 = vmatpush2.bf16.xpose.msra.mxu0 %v656
        %860 = vmatprep.subr.bf16.mxu0 0
        %861 = vmatpush2.bf16.xpose.msra.mxu0 %v653
        %862 = vmatprep.mubr.bf16.mxu0 0
        %863 = vmatmul.mubr.bf16.gmra.mxu0 %v527
        %v864 = vpop.f32.mrf.mxu0
        %v865 = vadd.f32 %v498, %v864
        %v866 = vpop.f32.mrf.mxu0
        %v867 = vadd.f32 %v498, %v866
        %v868 = vpop.f32.mrf.mxu0
        %v869 = vadd.f32 %v503, %v868
        %v870 = vpop.f32.mrf.mxu0
        %v871 = vadd.f32 %v503, %v870
        %872 = vmatprep.mubr.bf16.mxu0 0
        %873 = vmatmul.mubr.bf16.gmra.mxu0 %v530
        %v874 = vpop.f32.mrf.mxu0
        %v875 = vadd.f32 %v508, %v874
        %v876 = vpop.f32.mrf.mxu0
        %v877 = vadd.f32 %v508, %v876
        %v878 = vpop.f32.mrf.mxu0
        %v879 = vadd.f32 %v513, %v878
        %v880 = vpop.f32.mrf.mxu0
        %v881 = vadd.f32 %v513, %v880
        %882 = vdwg.mxu0
        %883 = vmatprep.subr.bf16.mxu0 0
        %884 = vmatpush1.bf16.xpose.msra.mxu0 %v698
        %885 = vmatprep.subr.bf16.mxu0 0
        %886 = vmatpush1.bf16.xpose.msra.mxu0 %v695
        %887 = vmatprep.subr.bf16.mxu0 0
        %888 = vmatpush1.bf16.xpose.msra.mxu0 %v692
        %889 = vmatprep.subr.bf16.mxu0 0
        %890 = vmatpush1.bf16.xpose.msra.mxu0 %v689
        %891 = vmatprep.subr.bf16.mxu0 0
        %892 = vmatpush1.bf16.xpose.msra.mxu0 %v686
        %893 = vmatprep.subr.bf16.mxu0 0
        %894 = vmatpush1.bf16.xpose.msra.mxu0 %v683
        %895 = vmatprep.subr.bf16.mxu0 0
        %896 = vmatpush1.bf16.xpose.msra.mxu0 %v680
        %897 = vmatprep.subr.bf16.mxu0 0
        %898 = vmatpush1.bf16.xpose.msra.mxu0 %v677
        %899 = vmatprep.subr.bf16.mxu0 0
        %900 = vmatpush2.bf16.xpose.msra.mxu0 %v722
        %901 = vmatprep.subr.bf16.mxu0 0
        %902 = vmatpush2.bf16.xpose.msra.mxu0 %v719
        %903 = vmatprep.subr.bf16.mxu0 0
        %904 = vmatpush2.bf16.xpose.msra.mxu0 %v716
        %905 = vmatprep.subr.bf16.mxu0 0
        %906 = vmatpush2.bf16.xpose.msra.mxu0 %v713
        %907 = vmatprep.subr.bf16.mxu0 0
        %908 = vmatpush2.bf16.xpose.msra.mxu0 %v710
        %909 = vmatprep.subr.bf16.mxu0 0
        %910 = vmatpush2.bf16.xpose.msra.mxu0 %v707
        %911 = vmatprep.subr.bf16.mxu0 0
        %912 = vmatpush2.bf16.xpose.msra.mxu0 %v704
        %913 = vmatprep.subr.bf16.mxu0 0
        %914 = vmatpush2.bf16.xpose.msra.mxu0 %v701
        %915 = vmatprep.mubr.bf16.mxu0 0
        %916 = vmatmul.mubr.bf16.gmra.mxu0 %v527
        %v917 = vpop.f32.mrf.mxu0
        %v918 = vadd.f32 %v498, %v917
        %v919 = vpop.f32.mrf.mxu0
        %v920 = vadd.f32 %v498, %v919
        %v921 = vpop.f32.mrf.mxu0
        %v922 = vadd.f32 %v503, %v921
        %v923 = vpop.f32.mrf.mxu0
        %v924 = vadd.f32 %v503, %v923
        %925 = vmatprep.mubr.bf16.mxu0 0
        %926 = vmatmul.mubr.bf16.gmra.mxu0 %v530
        %v927 = vpop.f32.mrf.mxu0
        %v928 = vadd.f32 %v508, %v927
        %v929 = vpop.f32.mrf.mxu0
        %v930 = vadd.f32 %v508, %v929
        %v931 = vpop.f32.mrf.mxu0
        %v932 = vadd.f32 %v513, %v931
        %v933 = vpop.f32.mrf.mxu0
        %v934 = vadd.f32 %v513, %v933
        %935 = vdwg.mxu0
        %v936 = vmax.f32 %v759, 0.0
        %v937 = vmax.f32 %v761, 0.0
        %v938 = vmax.f32 %v812, 0.0
        %v939 = vmax.f32 %v814, 0.0
        %v940 = vmax.f32 %v865, 0.0
        %v941 = vmax.f32 %v867, 0.0
        %v942 = vmax.f32 %v918, 0.0
        %v943 = vmax.f32 %v920, 0.0
        %v944 = vmax.f32 %v763, 0.0
        %v945 = vmax.f32 %v765, 0.0
        %v946 = vmax.f32 %v816, 0.0
        %v947 = vmax.f32 %v818, 0.0
        %v948 = vmax.f32 %v869, 0.0
        %v949 = vmax.f32 %v871, 0.0
        %v950 = vmax.f32 %v922, 0.0
        %v951 = vmax.f32 %v924, 0.0
        %v952 = vmax.f32 %v769, 0.0
        %v953 = vmax.f32 %v771, 0.0
        %v954 = vmax.f32 %v822, 0.0
        %v955 = vmax.f32 %v824, 0.0
        %v956 = vmax.f32 %v875, 0.0
        %v957 = vmax.f32 %v877, 0.0
        %v958 = vmax.f32 %v928, 0.0
        %v959 = vmax.f32 %v930, 0.0
        %v960 = vmax.f32 %v773, 0.0
        %v961 = vmax.f32 %v775, 0.0
        %v962 = vmax.f32 %v826, 0.0
        %v963 = vmax.f32 %v828, 0.0
        %v964 = vmax.f32 %v879, 0.0
        %v965 = vmax.f32 %v881, 0.0
        %v966 = vmax.f32 %v932, 0.0
        %v967 = vmax.f32 %v934, 0.0
        %v968 = vpack.c.bf16 %v944, %v936
        %v969 = vpack.c.bf16 %v945, %v937
        %v970 = vpack.c.bf16 %v946, %v938
        %v971 = vpack.c.bf16 %v947, %v939
        %v972 = vpack.c.bf16 %v948, %v940
        %v973 = vpack.c.bf16 %v949, %v941
        %v974 = vpack.c.bf16 %v950, %v942
        %v975 = vpack.c.bf16 %v951, %v943
        %v976 = vpack.c.bf16 %v960, %v952
        %v977 = vpack.c.bf16 %v961, %v953
        %v978 = vpack.c.bf16 %v962, %v954
        %v979 = vpack.c.bf16 %v963, %v955
        %v980 = vpack.c.bf16 %v964, %v956
        %v981 = vpack.c.bf16 %v965, %v957
        %v982 = vpack.c.bf16 %v966, %v958
        %v983 = vpack.c.bf16 %v967, %v959
        %985 = vset.pattern.permute.xlu0 0
        %986 = vperm.xlu0 %985, %v294
        %v987 = vpop.permute.xlu0 %986
        %990 = vset.pattern.permute.xlu0 0
        %991 = vperm.xlu0 %990, %v295
        %v992 = vpop.permute.xlu0 %991
        %995 = vset.pattern.permute.xlu0 0
        %996 = vperm.xlu0 %995, %v296
        %v997 = vpop.permute.xlu0 %996
        %1000 = vset.pattern.permute.xlu0 0
        %1001 = vperm.xlu0 %1000, %v297
        %v1002 = vpop.permute.xlu0 %1001
        %v1008 = vunpack.c.l.b16 %v290
        %v1009 = vunpack.c.l.b16 %v291
        %v1010 = vunpack.c.l.b16 %v292
        %v1011 = vunpack.c.l.b16 %v293
        %v1012 = vpack.c.b16 %v1009, %v1008
        %v1013 = vpack.c.b16 %v1011, %v1010
        %vm1014 = vcmask 261120
        %v1016 = vsel %vm1014, %v1012, 0
        %v1019 = vsel %vm1014, %v1013, 0
        %1021 = vmatprep.subr.bf16.mxu0 0
        %1022 = vmatpush1.bf16.msra.mxu0 0
        %1023 = vmatprep.subr.bf16.mxu0 0
        %1024 = vmatpush1.bf16.msra.mxu0 0
        %1025 = vmatprep.subr.bf16.mxu0 0
        %1026 = vmatpush1.bf16.msra.mxu0 0
        %1027 = vmatprep.subr.bf16.mxu0 0
        %1028 = vmatpush1.bf16.msra.mxu0 0
        %1029 = vmatprep.subr.bf16.mxu0 0
        %1030 = vmatpush1.bf16.msra.mxu0 0
        %1031 = vmatprep.subr.bf16.mxu0 0
        %1032 = vmatpush1.bf16.msra.mxu0 0
        %1033 = vmatprep.subr.bf16.mxu0 %v977
        %1034 = vmatpush1.bf16.msra.mxu0 %v976
        %1035 = vmatprep.subr.bf16.mxu0 %v969
        %1036 = vmatpush1.bf16.msra.mxu0 %v968
        %1037 = vmatprep.subr.bf16.mxu0 0
        %1038 = vmatpush2.bf16.msra.mxu0 0
        %1039 = vmatprep.subr.bf16.mxu0 0
        %1040 = vmatpush2.bf16.msra.mxu0 0
        %1041 = vmatprep.subr.bf16.mxu0 0
        %1042 = vmatpush2.bf16.msra.mxu0 0
        %1043 = vmatprep.subr.bf16.mxu0 0
        %1044 = vmatpush2.bf16.msra.mxu0 0
        %1045 = vmatprep.subr.bf16.mxu0 0
        %1046 = vmatpush2.bf16.msra.mxu0 0
        %1047 = vmatprep.subr.bf16.mxu0 0
        %1048 = vmatpush2.bf16.msra.mxu0 0
        %1049 = vmatprep.subr.bf16.mxu0 0
        %1050 = vmatpush2.bf16.msra.mxu0 0
        %1051 = vmatprep.subr.bf16.mxu0 0
        %1052 = vmatpush2.bf16.msra.mxu0 0
        %1053 = vmatprep.mubr.bf16.mxu0 0
        %1054 = vmatmul.mubr.bf16.gmra.mxu0 %v1016
        %v1055 = vpop.f32.mrf.mxu0
        %v1056 = vadd.f32 %v987, %v1055
        %v1057 = vpop.f32.mrf.mxu0
        %v1058 = vadd.f32 %v987, %v1057
        %v1059 = vpop.f32.mrf.mxu0
        %v1060 = vadd.f32 %v992, %v1059
        %v1061 = vpop.f32.mrf.mxu0
        %v1062 = vadd.f32 %v992, %v1061
        %1063 = vmatprep.mubr.bf16.mxu0 0
        %1064 = vmatmul.mubr.bf16.gmra.mxu0 %v1019
        %v1065 = vpop.f32.mrf.mxu0
        %v1066 = vadd.f32 %v997, %v1065
        %v1067 = vpop.f32.mrf.mxu0
        %v1068 = vadd.f32 %v997, %v1067
        %v1069 = vpop.f32.mrf.mxu0
        %v1070 = vadd.f32 %v1002, %v1069
        %v1071 = vpop.f32.mrf.mxu0
        %v1072 = vadd.f32 %v1002, %v1071
        %1073 = vdwg.mxu0
        %1074 = vmatprep.subr.bf16.mxu0 0
        %1075 = vmatpush1.bf16.msra.mxu0 0
        %1076 = vmatprep.subr.bf16.mxu0 0
        %1077 = vmatpush1.bf16.msra.mxu0 0
        %1078 = vmatprep.subr.bf16.mxu0 0
        %1079 = vmatpush1.bf16.msra.mxu0 0
        %1080 = vmatprep.subr.bf16.mxu0 0
        %1081 = vmatpush1.bf16.msra.mxu0 0
        %1082 = vmatprep.subr.bf16.mxu0 0
        %1083 = vmatpush1.bf16.msra.mxu0 0
        %1084 = vmatprep.subr.bf16.mxu0 0
        %1085 = vmatpush1.bf16.msra.mxu0 0
        %1086 = vmatprep.subr.bf16.mxu0 %v979
        %1087 = vmatpush1.bf16.msra.mxu0 %v978
        %1088 = vmatprep.subr.bf16.mxu0 %v971
        %1089 = vmatpush1.bf16.msra.mxu0 %v970
        %1090 = vmatprep.subr.bf16.mxu0 0
        %1091 = vmatpush2.bf16.msra.mxu0 0
        %1092 = vmatprep.subr.bf16.mxu0 0
        %1093 = vmatpush2.bf16.msra.mxu0 0
        %1094 = vmatprep.subr.bf16.mxu0 0
        %1095 = vmatpush2.bf16.msra.mxu0 0
        %1096 = vmatprep.subr.bf16.mxu0 0
        %1097 = vmatpush2.bf16.msra.mxu0 0
        %1098 = vmatprep.subr.bf16.mxu0 0
        %1099 = vmatpush2.bf16.msra.mxu0 0
        %1100 = vmatprep.subr.bf16.mxu0 0
        %1101 = vmatpush2.bf16.msra.mxu0 0
        %1102 = vmatprep.subr.bf16.mxu0 0
        %1103 = vmatpush2.bf16.msra.mxu0 0
        %1104 = vmatprep.subr.bf16.mxu0 0
        %1105 = vmatpush2.bf16.msra.mxu0 0
        %1106 = vmatprep.mubr.bf16.mxu0 0
        %1107 = vmatmul.mubr.bf16.gmra.mxu0 %v1016
        %v1108 = vpop.f32.mrf.mxu0
        %v1109 = vadd.f32 %v987, %v1108
        %v1110 = vpop.f32.mrf.mxu0
        %v1111 = vadd.f32 %v987, %v1110
        %v1112 = vpop.f32.mrf.mxu0
        %v1113 = vadd.f32 %v992, %v1112
        %v1114 = vpop.f32.mrf.mxu0
        %v1115 = vadd.f32 %v992, %v1114
        %1116 = vmatprep.mubr.bf16.mxu0 0
        %1117 = vmatmul.mubr.bf16.gmra.mxu0 %v1019
        %v1118 = vpop.f32.mrf.mxu0
        %v1119 = vadd.f32 %v997, %v1118
        %v1120 = vpop.f32.mrf.mxu0
        %v1121 = vadd.f32 %v997, %v1120
        %v1122 = vpop.f32.mrf.mxu0
        %v1123 = vadd.f32 %v1002, %v1122
        %v1124 = vpop.f32.mrf.mxu0
        %v1125 = vadd.f32 %v1002, %v1124
        %1126 = vdwg.mxu0
        %1127 = vmatprep.subr.bf16.mxu0 0
        %1128 = vmatpush1.bf16.msra.mxu0 0
        %1129 = vmatprep.subr.bf16.mxu0 0
        %1130 = vmatpush1.bf16.msra.mxu0 0
        %1131 = vmatprep.subr.bf16.mxu0 0
        %1132 = vmatpush1.bf16.msra.mxu0 0
        %1133 = vmatprep.subr.bf16.mxu0 0
        %1134 = vmatpush1.bf16.msra.mxu0 0
        %1135 = vmatprep.subr.bf16.mxu0 0
        %1136 = vmatpush1.bf16.msra.mxu0 0
        %1137 = vmatprep.subr.bf16.mxu0 0
        %1138 = vmatpush1.bf16.msra.mxu0 0
        %1139 = vmatprep.subr.bf16.mxu0 %v981
        %1140 = vmatpush1.bf16.msra.mxu0 %v980
        %1141 = vmatprep.subr.bf16.mxu0 %v973
        %1142 = vmatpush1.bf16.msra.mxu0 %v972
        %1143 = vmatprep.subr.bf16.mxu0 0
        %1144 = vmatpush2.bf16.msra.mxu0 0
        %1145 = vmatprep.subr.bf16.mxu0 0
        %1146 = vmatpush2.bf16.msra.mxu0 0
        %1147 = vmatprep.subr.bf16.mxu0 0
        %1148 = vmatpush2.bf16.msra.mxu0 0
        %1149 = vmatprep.subr.bf16.mxu0 0
        %1150 = vmatpush2.bf16.msra.mxu0 0
        %1151 = vmatprep.subr.bf16.mxu0 0
        %1152 = vmatpush2.bf16.msra.mxu0 0
        %1153 = vmatprep.subr.bf16.mxu0 0
        %1154 = vmatpush2.bf16.msra.mxu0 0
        %1155 = vmatprep.subr.bf16.mxu0 0
        %1156 = vmatpush2.bf16.msra.mxu0 0
        %1157 = vmatprep.subr.bf16.mxu0 0
        %1158 = vmatpush2.bf16.msra.mxu0 0
        %1159 = vmatprep.mubr.bf16.mxu0 0
        %1160 = vmatmul.mubr.bf16.gmra.mxu0 %v1016
        %v1161 = vpop.f32.mrf.mxu0
        %v1162 = vadd.f32 %v987, %v1161
        %v1163 = vpop.f32.mrf.mxu0
        %v1164 = vadd.f32 %v987, %v1163
        %v1165 = vpop.f32.mrf.mxu0
        %v1166 = vadd.f32 %v992, %v1165
        %v1167 = vpop.f32.mrf.mxu0
        %v1168 = vadd.f32 %v992, %v1167
        %1169 = vmatprep.mubr.bf16.mxu0 0
        %1170 = vmatmul.mubr.bf16.gmra.mxu0 %v1019
        %v1171 = vpop.f32.mrf.mxu0
        %v1172 = vadd.f32 %v997, %v1171
        %v1173 = vpop.f32.mrf.mxu0
        %v1174 = vadd.f32 %v997, %v1173
        %v1175 = vpop.f32.mrf.mxu0
        %v1176 = vadd.f32 %v1002, %v1175
        %v1177 = vpop.f32.mrf.mxu0
        %v1178 = vadd.f32 %v1002, %v1177
        %1179 = vdwg.mxu0
        %1180 = vmatprep.subr.bf16.mxu0 0
        %1181 = vmatpush1.bf16.msra.mxu0 0
        %1182 = vmatprep.subr.bf16.mxu0 0
        %1183 = vmatpush1.bf16.msra.mxu0 0
        %1184 = vmatprep.subr.bf16.mxu0 0
        %1185 = vmatpush1.bf16.msra.mxu0 0
        %1186 = vmatprep.subr.bf16.mxu0 0
        %1187 = vmatpush1.bf16.msra.mxu0 0
        %1188 = vmatprep.subr.bf16.mxu0 0
        %1189 = vmatpush1.bf16.msra.mxu0 0
        %1190 = vmatprep.subr.bf16.mxu0 0
        %1191 = vmatpush1.bf16.msra.mxu0 0
        %1192 = vmatprep.subr.bf16.mxu0 %v983
        %1193 = vmatpush1.bf16.msra.mxu0 %v982
        %1194 = vmatprep.subr.bf16.mxu0 %v975
        %1195 = vmatpush1.bf16.msra.mxu0 %v974
        %1196 = vmatprep.subr.bf16.mxu0 0
        %1197 = vmatpush2.bf16.msra.mxu0 0
        %1198 = vmatprep.subr.bf16.mxu0 0
        %1199 = vmatpush2.bf16.msra.mxu0 0
        %1200 = vmatprep.subr.bf16.mxu0 0
        %1201 = vmatpush2.bf16.msra.mxu0 0
        %1202 = vmatprep.subr.bf16.mxu0 0
        %1203 = vmatpush2.bf16.msra.mxu0 0
        %1204 = vmatprep.subr.bf16.mxu0 0
        %1205 = vmatpush2.bf16.msra.mxu0 0
        %1206 = vmatprep.subr.bf16.mxu0 0
        %1207 = vmatpush2.bf16.msra.mxu0 0
        %1208 = vmatprep.subr.bf16.mxu0 0
        %1209 = vmatpush2.bf16.msra.mxu0 0
        %1210 = vmatprep.subr.bf16.mxu0 0
        %1211 = vmatpush2.bf16.msra.mxu0 0
        %1212 = vmatprep.mubr.bf16.mxu0 0
        %1213 = vmatmul.mubr.bf16.gmra.mxu0 %v1016
        %v1214 = vpop.f32.mrf.mxu0
        %v1215 = vadd.f32 %v987, %v1214
        %v1216 = vpop.f32.mrf.mxu0
        %v1217 = vadd.f32 %v987, %v1216
        %v1218 = vpop.f32.mrf.mxu0
        %v1219 = vadd.f32 %v992, %v1218
        %v1220 = vpop.f32.mrf.mxu0
        %v1221 = vadd.f32 %v992, %v1220
        %1222 = vmatprep.mubr.bf16.mxu0 0
        %1223 = vmatmul.mubr.bf16.gmra.mxu0 %v1019
        %v1224 = vpop.f32.mrf.mxu0
        %v1225 = vadd.f32 %v997, %v1224
        %v1226 = vpop.f32.mrf.mxu0
        %v1227 = vadd.f32 %v997, %v1226
        %v1228 = vpop.f32.mrf.mxu0
        %v1229 = vadd.f32 %v1002, %v1228
        %v1230 = vpop.f32.mrf.mxu0
        %v1231 = vadd.f32 %v1002, %v1230
        %1232 = vdwg.mxu0
        %v1233 = vmax.f32 %v1056, 0.0
        %v1234 = vmax.f32 %v1058, 0.0
        %v1235 = vmax.f32 %v1109, 0.0
        %v1236 = vmax.f32 %v1111, 0.0
        %v1237 = vmax.f32 %v1162, 0.0
        %v1238 = vmax.f32 %v1164, 0.0
        %v1239 = vmax.f32 %v1215, 0.0
        %v1240 = vmax.f32 %v1217, 0.0
        %v1241 = vmax.f32 %v1060, 0.0
        %v1242 = vmax.f32 %v1062, 0.0
        %v1243 = vmax.f32 %v1113, 0.0
        %v1244 = vmax.f32 %v1115, 0.0
        %v1245 = vmax.f32 %v1166, 0.0
        %v1246 = vmax.f32 %v1168, 0.0
        %v1247 = vmax.f32 %v1219, 0.0
        %v1248 = vmax.f32 %v1221, 0.0
        %v1249 = vmax.f32 %v1066, 0.0
        %v1250 = vmax.f32 %v1068, 0.0
        %v1251 = vmax.f32 %v1119, 0.0
        %v1252 = vmax.f32 %v1121, 0.0
        %v1253 = vmax.f32 %v1172, 0.0
        %v1254 = vmax.f32 %v1174, 0.0
        %v1255 = vmax.f32 %v1225, 0.0
        %v1256 = vmax.f32 %v1227, 0.0
        %v1257 = vmax.f32 %v1070, 0.0
        %v1258 = vmax.f32 %v1072, 0.0
        %v1259 = vmax.f32 %v1123, 0.0
        %v1260 = vmax.f32 %v1125, 0.0
        %v1261 = vmax.f32 %v1176, 0.0
        %v1262 = vmax.f32 %v1178, 0.0
        %v1263 = vmax.f32 %v1229, 0.0
        %v1264 = vmax.f32 %v1231, 0.0
        %1266 = vset.pattern.permute.xlu0 0
        %1267 = vperm.xlu0 %1266, %v298
        %v1268 = vpop.permute.xlu0 %1267
        %1271 = vset.pattern.permute.xlu0 0
        %1272 = vperm.xlu0 %1271, %v299
        %v1273 = vpop.permute.xlu0 %1272
        %1276 = vset.pattern.permute.xlu0 0
        %1277 = vperm.xlu0 %1276, %v300
        %v1278 = vpop.permute.xlu0 %1277
        %1281 = vset.pattern.permute.xlu0 0
        %1282 = vperm.xlu0 %1281, %v301
        %v1283 = vpop.permute.xlu0 %1282
        %v1285 = vmul.f32 %v1233, %v1268
        %v1286 = vmul.f32 %v1234, %v1268
        %v1287 = vmul.f32 %v1235, %v1268
        %v1288 = vmul.f32 %v1236, %v1268
        %v1289 = vmul.f32 %v1237, %v1268
        %v1290 = vmul.f32 %v1238, %v1268
        %v1291 = vmul.f32 %v1239, %v1268
        %v1292 = vmul.f32 %v1240, %v1268
        %v1293 = vmul.f32 %v1241, %v1273
        %v1294 = vmul.f32 %v1242, %v1273
        %v1295 = vmul.f32 %v1243, %v1273
        %v1296 = vmul.f32 %v1244, %v1273
        %v1297 = vmul.f32 %v1245, %v1273
        %v1298 = vmul.f32 %v1246, %v1273
        %v1299 = vmul.f32 %v1247, %v1273
        %v1300 = vmul.f32 %v1248, %v1273
        %v1301 = vmul.f32 %v1249, %v1278
        %v1302 = vmul.f32 %v1250, %v1278
        %v1303 = vmul.f32 %v1251, %v1278
        %v1304 = vmul.f32 %v1252, %v1278
        %v1305 = vmul.f32 %v1253, %v1278
        %v1306 = vmul.f32 %v1254, %v1278
        %v1307 = vmul.f32 %v1255, %v1278
        %v1308 = vmul.f32 %v1256, %v1278
        %v1309 = vmul.f32 %v1257, %v1283
        %v1310 = vmul.f32 %v1258, %v1283
        %v1311 = vmul.f32 %v1259, %v1283
        %v1312 = vmul.f32 %v1260, %v1283
        %v1313 = vmul.f32 %v1261, %v1283
        %v1314 = vmul.f32 %v1262, %v1283
        %v1315 = vmul.f32 %v1263, %v1283
        %v1316 = vmul.f32 %v1264, %v1283
        %v1317 = vadd.f32 %v1285, %v1293
        %v1318 = vadd.f32 %v1317, %v1301
        %v1319 = vadd.f32 %v1318, %v1309
        %v1320 = vrot.slane %v1319, 4
        %v1321 = vadd.f32 %v1319, %v1320
        %v1322 = vrot.slane %v1321, 2
        %v1323 = vadd.f32 %v1321, %v1322
        %v1324 = vrot.slane %v1323, 1
        %v1325 = vadd.f32 %v1323, %v1324
        %v1326 = vadd.f32 %v1286, %v1294
        %v1327 = vadd.f32 %v1326, %v1302
        %v1328 = vadd.f32 %v1327, %v1310
        %v1329 = vrot.slane %v1328, 4
        %v1330 = vadd.f32 %v1328, %v1329
        %v1331 = vrot.slane %v1330, 2
        %v1332 = vadd.f32 %v1330, %v1331
        %v1333 = vrot.slane %v1332, 1
        %v1334 = vadd.f32 %v1332, %v1333
        %v1335 = vadd.f32 %v1287, %v1295
        %v1336 = vadd.f32 %v1335, %v1303
        %v1337 = vadd.f32 %v1336, %v1311
        %v1338 = vrot.slane %v1337, 4
        %v1339 = vadd.f32 %v1337, %v1338
        %v1340 = vrot.slane %v1339, 2
        %v1341 = vadd.f32 %v1339, %v1340
        %v1342 = vrot.slane %v1341, 1
        %v1343 = vadd.f32 %v1341, %v1342
        %v1344 = vadd.f32 %v1288, %v1296
        %v1345 = vadd.f32 %v1344, %v1304
        %v1346 = vadd.f32 %v1345, %v1312
        %v1347 = vrot.slane %v1346, 4
        %v1348 = vadd.f32 %v1346, %v1347
        %v1349 = vrot.slane %v1348, 2
        %v1350 = vadd.f32 %v1348, %v1349
        %v1351 = vrot.slane %v1350, 1
        %v1352 = vadd.f32 %v1350, %v1351
        %v1353 = vadd.f32 %v1289, %v1297
        %v1354 = vadd.f32 %v1353, %v1305
        %v1355 = vadd.f32 %v1354, %v1313
        %v1356 = vrot.slane %v1355, 4
        %v1357 = vadd.f32 %v1355, %v1356
        %v1358 = vrot.slane %v1357, 2
        %v1359 = vadd.f32 %v1357, %v1358
        %v1360 = vrot.slane %v1359, 1
        %v1361 = vadd.f32 %v1359, %v1360
        %v1362 = vadd.f32 %v1290, %v1298
        %v1363 = vadd.f32 %v1362, %v1306
        %v1364 = vadd.f32 %v1363, %v1314
        %v1365 = vrot.slane %v1364, 4
        %v1366 = vadd.f32 %v1364, %v1365
        %v1367 = vrot.slane %v1366, 2
        %v1368 = vadd.f32 %v1366, %v1367
        %v1369 = vrot.slane %v1368, 1
        %v1370 = vadd.f32 %v1368, %v1369
        %v1371 = vadd.f32 %v1291, %v1299
        %v1372 = vadd.f32 %v1371, %v1307
        %v1373 = vadd.f32 %v1372, %v1315
        %v1374 = vrot.slane %v1373, 4
        %v1375 = vadd.f32 %v1373, %v1374
        %v1376 = vrot.slane %v1375, 2
        %v1377 = vadd.f32 %v1375, %v1376
        %v1378 = vrot.slane %v1377, 1
        %v1379 = vadd.f32 %v1377, %v1378
        %v1380 = vadd.f32 %v1292, %v1300
        %v1381 = vadd.f32 %v1380, %v1308
        %v1382 = vadd.f32 %v1381, %v1316
        %v1383 = vrot.slane %v1382, 4
        %v1384 = vadd.f32 %v1382, %v1383
        %v1385 = vrot.slane %v1384, 2
        %v1386 = vadd.f32 %v1384, %v1385
        %v1387 = vrot.slane %v1386, 1
        %v1388 = vadd.f32 %v1386, %v1387
        %1390 = vset.pattern.permute.xlu0 0
        %1391 = vperm.xlu0 %1390, %v302
        %v1392 = vpop.permute.xlu0 %1391
        %v1394 = vlaneseq
        %v1395 = vshrl.u32 %v1394, 7
        %v1396 = vsub.s32 0, %v1395
        %v1397 = vrot.slane %v1392, %v1396
        %v1398 = vadd.f32 %v1325, %v1397
        %v1399 = vadd.f32 %v1334, %v1397
        %v1400 = vadd.f32 %v1343, %v1397
        %v1401 = vadd.f32 %v1352, %v1397
        %v1402 = vadd.f32 %v1361, %v1397
        %v1403 = vadd.f32 %v1370, %v1397
        %v1404 = vadd.f32 %v1379, %v1397
        %v1405 = vadd.f32 %v1388, %v1397
        %v1414 = vcombine.low %v1398, %v1399
        %v1415 = vcombine.low %v1400, %v1401
        %v1416 = vcombine.low %v1402, %v1403
        %v1417 = vcombine.low %v1404, %v1405
        %v1419 = vunpack.c.l.s4 1966171168
        %v1420 = vunpack.c.0.s8 %v1419
        %v1421 = vlaneseq
        %v1422 = vshrl.u32 %v1421, 7
        %v1423 = vsub.s32 %v1420, %v1422
        %v1424 = vrot.slane %v1414, %v1423
        %v1426 = vunpack.c.l.s4 1966171168
        %v1427 = vunpack.c.0.s8 %v1426
        %v1428 = vlaneseq
        %v1429 = vshrl.u32 %v1428, 7
        %v1430 = vsub.s32 %v1427, %v1429
        %v1431 = vrot.slane %v1415, %v1430
        %v1433 = vunpack.c.l.s4 1966171168
        %v1434 = vunpack.c.0.s8 %v1433
        %v1435 = vlaneseq
        %v1436 = vshrl.u32 %v1435, 7
        %v1437 = vsub.s32 %v1434, %v1436
        %v1438 = vrot.slane %v1416, %v1437
        %v1440 = vunpack.c.l.s4 1966171168
        %v1441 = vunpack.c.0.s8 %v1440
        %v1442 = vlaneseq
        %v1443 = vshrl.u32 %v1442, 7
        %v1444 = vsub.s32 %v1441, %v1443
        %v1445 = vrot.slane %v1417, %v1444
        %v1446 = vcombine.low %v1424, %v1431
        %v1447 = vcombine.low %v1438, %v1445
        %v1449 = vunpack.c.l.s4 1966171168
        %v1450 = vunpack.c.0.s8 %v1449
        %v1451 = vlaneseq
        %v1452 = vshrl.u32 %v1451, 7
        %v1453 = vsub.s32 %v1450, %v1452
        %v1454 = vrot.slane %v1446, %v1453
        %v1456 = vunpack.c.l.s4 1966171168
        %v1457 = vunpack.c.0.s8 %v1456
        %v1458 = vlaneseq
        %v1459 = vshrl.u32 %v1458, 7
        %v1460 = vsub.s32 %v1457, %v1459
        %v1461 = vrot.slane %v1447, %v1460
        %v1462 = vcombine.low %v1454, %v1461
        %1464 = vst [vmem:[%s274] sm:$0xff] %v1462
        %s1465 = sand.u32 %s183, 1
        %s1466 = scalar_lea.sflag [#allocation4], %s1465
        %s1467 = sand.u32 %s183, 1
        %s1468 = smul.addr %s1467, 8
        %s1469 = scalar_lea.vmem [#allocation3], %s1468
        // Predicated region
        $region49: #{tpu_custom_call.1} parent=47 // pred_check
          %p1470 = pneg %p193
        $region50: #{tpu_custom_call.1} parent=47 // pred_check_branch
          %1472 = sbr.rel (%p1470) target = $region52
        $region51: #{tpu_custom_call.1} parent=47 // pred_region
          %s1474 = ssub.s32 128, 128
          %1475 = vsyncadd %s1466, %s1474
          %s1476 = smul.addr %s23, 8
          %s1477 = smul.addr %s1476, 16
          %s1478 = scalar_lea.hbm %s7, %s1477
          %s1480 = sshll.u32 %s1469, 4
          %s1481 = int_to_ptr.vmem [resolvable:$true] %s1480
          %1483 = dma.vmem_to_hbm [thread:$0]  %s1481, 128, %s1478, %s1466
        $region52: #{tpu_custom_call.1} parent=47 // pred_fallthru
          _
      $region48: #{tpu_custom_call.1} parent=5 // pred_fallthru
        _
      %p1484 = scmp.le.s32.totalorder 2, %s18
      // Predicated region
      $region53: #{tpu_custom_call.1} parent=5 // pred_check
        %p1485 = pneg %p1484
      $region54: #{tpu_custom_call.1} parent=5 // pred_check_branch
        %1487 = sbr.rel (%p1485) target = $region56
      $region55: #{tpu_custom_call.1} parent=5 // pred_region
        %s1488 = ssub.s32 %s18, 2
        // Predicated region
        $region57: #{tpu_custom_call.1} parent=55 // pred_check
          %p1489 = pneg %p199
        $region58: #{tpu_custom_call.1} parent=55 // pred_check_branch
          %1491 = sbr.rel (%p1489) target = $region60
        $region59: #{tpu_custom_call.1} parent=55 // pred_region
          %s1492 = sand.u32 %s184, 1
          %s1493 = scalar_lea.sflag [#allocation4], %s1492
          %s1494 = sand.u32 %s184, 1
          %s1495 = smul.addr %s1494, 8
          %s1496 = scalar_lea.vmem [#allocation3], %s1495
          %1497 = dma.done %s1493, 128
        $region60: #{tpu_custom_call.1} parent=55 // pred_fallthru
          _
      $region56: #{tpu_custom_call.1} parent=5 // pred_fallthru
        _
    $region6: #{tpu_custom_call.1} parent=1 // loop_footer
      %s22 = sadd.s32 1, %s18
    $region7: #{tpu_custom_call.1} parent=1 // loop_footer_branch
      %17 = sbr.rel target = $region3
    $region8: #{tpu_custom_call.1} parent=1 // loop_exit
      _
    %1498 = vsyncpa [#allocation4], 1
    %s1499 = scalar_lea.sflag [#allocation4], 1
    %1500 = vsyncpa %s1499, 1

</llo_original>
